<compile_context>
chip_gen: v5e
topology: v5e:2x2
jax: 0.10.0
libtpu: 0.0.40
codegen_flags: <defaults>
</compile_context>

<pallas_src>
import functools
import math

import jax
import jax.numpy as jnp
from jax.experimental import pallas as pl
from jax.experimental.pallas import tpu as pltpu

LANE = 128        # lane width: all feature dims padded to a multiple of this
TILE_B = 128      # batch rows per grid step (multiple of 8 sublanes, >=128)
N_LAYERS = 5


def _round_up(x, m):
    return ((x + m - 1) // m) * m


# -----------------------------------------------------------------------------
# Kernel
# -----------------------------------------------------------------------------
def _generator_mlp_kernel(noise_ref, w_ref, b_ref, out_ref):
    """Fused 5-layer MLP for one batch tile.

    noise_ref : (TILE_B, PAD)        f32, zero-padded past the real noise dim
    w_ref     : (5, PAD, PAD)        bf16 weight slab (zero-padded), VMEM-resident
    b_ref     : (5, 1, PAD)          f32 bias slab (zero-padded), VMEM-resident
    out_ref   : (TILE_B, PAD)        f32 lane-dense output
    """
    h = noise_ref[...].astype(jnp.bfloat16)
    for layer in range(N_LAYERS - 1):
        acc = jnp.dot(h, w_ref[layer],
                      preferred_element_type=jnp.float32) + b_ref[layer]
        h = jnp.maximum(acc, 0.0).astype(jnp.bfloat16)
    out_ref[...] = (jnp.dot(h, w_ref[N_LAYERS - 1],
                            preferred_element_type=jnp.float32)
                    + b_ref[N_LAYERS - 1])


# -----------------------------------------------------------------------------
# Wrapper
# -----------------------------------------------------------------------------
@functools.partial(jax.jit, static_argnames=("tile_b",))
def generator_mlp(noise, w_slab, b_slab, *, tile_b=TILE_B):
    """Run the fused MLP. noise: (B, noise_dim) f32. Returns (B, PAD) f32."""
    batch, noise_dim = noise.shape
    _, pad, _ = w_slab.shape

    pad_batch = _round_up(max(batch, tile_b), tile_b)
    noise_p = jnp.zeros((pad_batch, pad), jnp.float32)
    noise_p = noise_p.at[:batch, :noise_dim].set(noise)

    grid = (pad_batch // tile_b,)
    flops = 2 * pad_batch * N_LAYERS * pad * pad
    bytes_accessed = (noise_p.size * 4 + w_slab.size * 2
                      + b_slab.size * 4 + pad_batch * pad * 4)

    out_padded = pl.pallas_call(
        _generator_mlp_kernel,
        out_shape=jax.ShapeDtypeStruct((pad_batch, pad), jnp.float32),
        grid=grid,
        in_specs=[
            pl.BlockSpec((tile_b, pad), lambda i: (i, 0)),
            # Constant block index -> weight / bias slabs fetched once, resident.
            pl.BlockSpec((N_LAYERS, pad, pad), lambda i: (0, 0, 0)),
            pl.BlockSpec((N_LAYERS, 1, pad), lambda i: (0, 0, 0)),
        ],
        out_specs=pl.BlockSpec((tile_b, pad), lambda i: (i, 0)),
        compiler_params=pltpu.CompilerParams(
            dimension_semantics=("parallel",)),
        cost_estimate=pl.CostEstimate(
            flops=int(flops), transcendentals=0,
            bytes_accessed=int(bytes_accessed)),
    )(noise_p, w_slab, b_slab)

    return out_padded[:batch]   # still PAD lanes wide; caller slices real cols


# -----------------------------------------------------------------------------
# Parameter init (mirrors nn.Linear defaults: U[-1/sqrt(fan_in), 1/sqrt(fan_in)])
# -----------------------------------------------------------------------------
def init_generator_params(key, input_dim, output_dim):
    hidden = input_dim // 2
    dims = [(input_dim, hidden), (hidden, hidden), (hidden, hidden),
            (hidden, hidden), (hidden, output_dim)]
    pad = _round_up(max(input_dim, hidden, output_dim), LANE)

    w_slab = jnp.zeros((N_LAYERS, pad, pad), jnp.float32)
    b_slab = jnp.zeros((N_LAYERS, 1, pad), jnp.float32)
    for layer, (fan_in, fan_out) in enumerate(dims):
        key, kw, kb = jax.random.split(key, 3)
        bound = 1.0 / math.sqrt(fan_in)
        w = jax.random.uniform(kw, (fan_in, fan_out), jnp.float32, -bound, bound)
        b = jax.random.uniform(kb, (fan_out,), jnp.float32, -bound, bound)
        w_slab = w_slab.at[layer, :fan_in, :fan_out].set(w)
        b_slab = b_slab.at[layer, 0, :fan_out].set(b)

    return {
        "w": w_slab.astype(jnp.bfloat16),   # bf16 weights, f32 accumulation
        "b": b_slab,                        # f32 biases
        "input_dim": input_dim,
        "output_dim": output_dim,
        "pad": pad,
    }


# -----------------------------------------------------------------------------
# Forward pass (semantics of Generator.forward)
# -----------------------------------------------------------------------------
def generator_forward(params, key, noise_dim, raw_attack,
                      nonfunctional_features_index):
    """noise ~ U(0,1); MLP (Pallas kernel); scatter into nonfunctional columns."""
    batch = raw_attack.shape[0]
    noise = jax.random.uniform(key, (batch, noise_dim), jnp.float32, 0.0, 1.0)
    gen_padded = generator_mlp(noise, params["w"], params["b"])
    generator_out = gen_padded[:, :params["output_dim"]]
    # TODO(synk): optionally fuse this column scatter into the kernel epilogue
    # via a one-hot (out_dim, n_features) matmul + input_output_aliases.
    return raw_attack.at[:, nonfunctional_features_index].set(generator_out)


# -----------------------------------------------------------------------------
# Pure-JAX reference (same bf16 weight/activation casts) for a correctness check
# -----------------------------------------------------------------------------
def _reference_mlp(noise, params):
    w = params["w"].astype(jnp.float32)
    b = params["b"]
    pad = params["pad"]
    batch, nd = noise.shape
    h = jnp.zeros((batch, pad), jnp.float32).at[:, :nd].set(noise)
    h = h.astype(jnp.bfloat16)
    for layer in range(N_LAYERS - 1):
        acc = jnp.dot(h.astype(jnp.float32), w[layer]) + b[layer]
        h = jnp.maximum(acc, 0.0).astype(jnp.bfloat16)
    out = jnp.dot(h.astype(jnp.float32), w[N_LAYERS - 1]) + b[N_LAYERS - 1]
    return out[:, :params["output_dim"]]


if __name__ == "__main__":
    key = jax.random.PRNGKey(0)
    k_param, k_noise, k_attack = jax.random.split(key, 3)

    # Small shapes consistent with the module.
    input_dim = 32          # latent / noise dimension
    output_dim = 8          # number of nonfunctional features to overwrite
    batch = 4
    n_features = 24         # total feature count of a raw attack vector

    params = init_generator_params(k_param, input_dim, output_dim)

    raw_attack = jax.random.normal(k_attack, (batch, n_features), jnp.float32)
    nonfunctional_features_index = jnp.array([1, 3, 5, 7, 10, 15, 20, 23],
                                             dtype=jnp.int32)

    adversarial_attack = generator_forward(
        params, k_noise, input_dim, raw_attack, nonfunctional_features_index)
    jax.block_until_ready(adversarial_attack)

    assert adversarial_attack.shape == (batch, n_features)
    assert adversarial_attack.dtype == jnp.float32

    # Correctness check against a pure-JAX reference using the same noise.
    noise_chk = jax.random.uniform(k_noise, (batch, input_dim), jnp.float32,
                                   0.0, 1.0)
    ref_out = _reference_mlp(noise_chk, params)
    ref_attack = raw_attack.at[:, nonfunctional_features_index].set(ref_out)
    assert jnp.allclose(adversarial_attack, ref_attack, rtol=1e-3, atol=1e-3), (
        "kernel output mismatch vs reference")

    print("KERNEL_OK")
</pallas_src>

<mosaic_0001>
module attributes {stable_mosaic.version = 11 : i64} {
  func.func @_generator_mlp_kernel(%arg0: i32, %arg1: memref<128x128xf32, #tpu.memory_space<vmem>>, %arg2: memref<5x128x128xbf16, #tpu.memory_space<vmem>>, %arg3: memref<5x1x128xf32, #tpu.memory_space<vmem>>, %arg4: memref<128x128xf32, #tpu.memory_space<vmem>>) attributes {dimension_semantics = [#tpu.dimension_semantics<parallel>], iteration_bounds = array<i64: 1>, scalar_prefetch = 0 : i64, scratch_operands = 0 : i64, tpu.core_type = #tpu.core_type<tc>, window_params = [{transform_indices = @transform_0, window_bounds = array<i64: 128, 128>}, {pipeline_mode = #tpu.pipeline_mode<synchronous>, transform_indices = @transform_1, window_bounds = array<i64: 5, 128, 128>}, {pipeline_mode = #tpu.pipeline_mode<synchronous>, transform_indices = @transform_2, window_bounds = array<i64: 5, 1, 128>}, {transform_indices = @transform_3, window_bounds = array<i64: 128, 128>}]} {
    %c0 = arith.constant 0 : index
    %c0_0 = arith.constant 0 : index
    %0 = vector.load %arg1[%c0, %c0_0] : memref<128x128xf32, #tpu.memory_space<vmem>>, vector<128x128xf32>
    %1 = arith.truncf %0 : vector<128x128xf32> to vector<128x128xbf16>
    %c0_1 = arith.constant 0 : index
    %c0_2 = arith.constant 0 : index
    %c0_3 = arith.constant 0 : index
    %2 = vector.load %arg2[%c0_1, %c0_2, %c0_3] : memref<5x128x128xbf16, #tpu.memory_space<vmem>>, vector<1x128x128xbf16>
    %3 = vector.shape_cast %2 : vector<1x128x128xbf16> to vector<128x128xbf16>
    %cst = arith.constant dense<0.000000e+00> : vector<128x128xf32>
    %4 = tpu.matmul %1, %3, %cst {dimension_numbers = #tpu.dot_dimension_numbers<[1], [0], [0], [1], [0, 0, 1, 1], [], []>} : vector<128x128xbf16>, vector<128x128xbf16>, vector<128x128xf32> -> vector<128x128xf32>
    %c0_4 = arith.constant 0 : index
    %c0_5 = arith.constant 0 : index
    %c0_6 = arith.constant 0 : index
    %5 = vector.load %arg3[%c0_4, %c0_5, %c0_6] : memref<5x1x128xf32, #tpu.memory_space<vmem>>, vector<1x1x128xf32>
    %6 = vector.shape_cast %5 : vector<1x1x128xf32> to vector<1x128xf32>
    %7 = vector.broadcast %6 : vector<1x128xf32> to vector<128x128xf32>
    %8 = arith.addf %4, %7 : vector<128x128xf32>
    %cst_7 = arith.constant 0.000000e+00 : f32
    %9 = vector.broadcast %cst_7 : f32 to vector<128x128xf32>
    %10 = arith.maximumf %8, %9 : vector<128x128xf32>
    %11 = arith.truncf %10 : vector<128x128xf32> to vector<128x128xbf16>
    %c1 = arith.constant 1 : index
    %c0_8 = arith.constant 0 : index
    %c0_9 = arith.constant 0 : index
    %12 = vector.load %arg2[%c1, %c0_8, %c0_9] : memref<5x128x128xbf16, #tpu.memory_space<vmem>>, vector<1x128x128xbf16>
    %13 = vector.shape_cast %12 : vector<1x128x128xbf16> to vector<128x128xbf16>
    %cst_10 = arith.constant dense<0.000000e+00> : vector<128x128xf32>
    %14 = tpu.matmul %11, %13, %cst_10 {dimension_numbers = #tpu.dot_dimension_numbers<[1], [0], [0], [1], [0, 0, 1, 1], [], []>} : vector<128x128xbf16>, vector<128x128xbf16>, vector<128x128xf32> -> vector<128x128xf32>
    %c1_11 = arith.constant 1 : index
    %c0_12 = arith.constant 0 : index
    %c0_13 = arith.constant 0 : index
    %15 = vector.load %arg3[%c1_11, %c0_12, %c0_13] : memref<5x1x128xf32, #tpu.memory_space<vmem>>, vector<1x1x128xf32>
    %16 = vector.shape_cast %15 : vector<1x1x128xf32> to vector<1x128xf32>
    %17 = vector.broadcast %16 : vector<1x128xf32> to vector<128x128xf32>
    %18 = arith.addf %14, %17 : vector<128x128xf32>
    %cst_14 = arith.constant 0.000000e+00 : f32
    %19 = vector.broadcast %cst_14 : f32 to vector<128x128xf32>
    %20 = arith.maximumf %18, %19 : vector<128x128xf32>
    %21 = arith.truncf %20 : vector<128x128xf32> to vector<128x128xbf16>
    %c2 = arith.constant 2 : index
    %c0_15 = arith.constant 0 : index
    %c0_16 = arith.constant 0 : index
    %22 = vector.load %arg2[%c2, %c0_15, %c0_16] : memref<5x128x128xbf16, #tpu.memory_space<vmem>>, vector<1x128x128xbf16>
    %23 = vector.shape_cast %22 : vector<1x128x128xbf16> to vector<128x128xbf16>
    %cst_17 = arith.constant dense<0.000000e+00> : vector<128x128xf32>
    %24 = tpu.matmul %21, %23, %cst_17 {dimension_numbers = #tpu.dot_dimension_numbers<[1], [0], [0], [1], [0, 0, 1, 1], [], []>} : vector<128x128xbf16>, vector<128x128xbf16>, vector<128x128xf32> -> vector<128x128xf32>
    %c2_18 = arith.constant 2 : index
    %c0_19 = arith.constant 0 : index
    %c0_20 = arith.constant 0 : index
    %25 = vector.load %arg3[%c2_18, %c0_19, %c0_20] : memref<5x1x128xf32, #tpu.memory_space<vmem>>, vector<1x1x128xf32>
    %26 = vector.shape_cast %25 : vector<1x1x128xf32> to vector<1x128xf32>
    %27 = vector.broadcast %26 : vector<1x128xf32> to vector<128x128xf32>
    %28 = arith.addf %24, %27 : vector<128x128xf32>
    %cst_21 = arith.constant 0.000000e+00 : f32
    %29 = vector.broadcast %cst_21 : f32 to vector<128x128xf32>
    %30 = arith.maximumf %28, %29 : vector<128x128xf32>
    %31 = arith.truncf %30 : vector<128x128xf32> to vector<128x128xbf16>
    %c3 = arith.constant 3 : index
    %c0_22 = arith.constant 0 : index
    %c0_23 = arith.constant 0 : index
    %32 = vector.load %arg2[%c3, %c0_22, %c0_23] : memref<5x128x128xbf16, #tpu.memory_space<vmem>>, vector<1x128x128xbf16>
    %33 = vector.shape_cast %32 : vector<1x128x128xbf16> to vector<128x128xbf16>
    %cst_24 = arith.constant dense<0.000000e+00> : vector<128x128xf32>
    %34 = tpu.matmul %31, %33, %cst_24 {dimension_numbers = #tpu.dot_dimension_numbers<[1], [0], [0], [1], [0, 0, 1, 1], [], []>} : vector<128x128xbf16>, vector<128x128xbf16>, vector<128x128xf32> -> vector<128x128xf32>
    %c3_25 = arith.constant 3 : index
    %c0_26 = arith.constant 0 : index
    %c0_27 = arith.constant 0 : index
    %35 = vector.load %arg3[%c3_25, %c0_26, %c0_27] : memref<5x1x128xf32, #tpu.memory_space<vmem>>, vector<1x1x128xf32>
    %36 = vector.shape_cast %35 : vector<1x1x128xf32> to vector<1x128xf32>
    %37 = vector.broadcast %36 : vector<1x128xf32> to vector<128x128xf32>
    %38 = arith.addf %34, %37 : vector<128x128xf32>
    %cst_28 = arith.constant 0.000000e+00 : f32
    %39 = vector.broadcast %cst_28 : f32 to vector<128x128xf32>
    %40 = arith.maximumf %38, %39 : vector<128x128xf32>
    %41 = arith.truncf %40 : vector<128x128xf32> to vector<128x128xbf16>
    %c4 = arith.constant 4 : index
    %c0_29 = arith.constant 0 : index
    %c0_30 = arith.constant 0 : index
    %42 = vector.load %arg2[%c4, %c0_29, %c0_30] : memref<5x128x128xbf16, #tpu.memory_space<vmem>>, vector<1x128x128xbf16>
    %43 = vector.shape_cast %42 : vector<1x128x128xbf16> to vector<128x128xbf16>
    %cst_31 = arith.constant dense<0.000000e+00> : vector<128x128xf32>
    %44 = tpu.matmul %41, %43, %cst_31 {dimension_numbers = #tpu.dot_dimension_numbers<[1], [0], [0], [1], [0, 0, 1, 1], [], []>} : vector<128x128xbf16>, vector<128x128xbf16>, vector<128x128xf32> -> vector<128x128xf32>
    %c4_32 = arith.constant 4 : index
    %c0_33 = arith.constant 0 : index
    %c0_34 = arith.constant 0 : index
    %45 = vector.load %arg3[%c4_32, %c0_33, %c0_34] : memref<5x1x128xf32, #tpu.memory_space<vmem>>, vector<1x1x128xf32>
    %46 = vector.shape_cast %45 : vector<1x1x128xf32> to vector<1x128xf32>
    %47 = vector.broadcast %46 : vector<1x128xf32> to vector<128x128xf32>
    %48 = arith.addf %44, %47 : vector<128x128xf32>
    %c0_35 = arith.constant 0 : index
    %c0_36 = arith.constant 0 : index
    %49 = vector.load %arg4[%c0_35, %c0_36] : memref<128x128xf32, #tpu.memory_space<vmem>>, vector<128x128xf32>
    tpu.vector_store %arg4[%c0_35, %c0_36], %48 {strides = array<i32>} : memref<128x128xf32, #tpu.memory_space<vmem>>, vector<128x128xf32>,
    return
  }
  func.func @transform_0(%arg0: i32) -> (i32, i32) {
    %c0_i32 = arith.constant 0 : i32
    %c0_i32_0 = arith.constant 0 : i32
    return %arg0, %c0_i32 : i32, i32
  }
  func.func @transform_1(%arg0: i32) -> (i32, i32, i32) {
    %c0_i32 = arith.constant 0 : i32
    %c0_i32_0 = arith.constant 0 : i32
    %c0_i32_1 = arith.constant 0 : i32
    %c0_i32_2 = arith.constant 0 : i32
    return %c0_i32, %c0_i32_0, %c0_i32_1 : i32, i32, i32
  }
  func.func @transform_2(%arg0: i32) -> (i32, i32, i32) {
    %c0_i32 = arith.constant 0 : i32
    %c0_i32_0 = arith.constant 0 : i32
    %c0_i32_1 = arith.constant 0 : i32
    %c0_i32_2 = arith.constant 0 : i32
    return %c0_i32, %c0_i32_0, %c0_i32_1 : i32, i32, i32
  }
  func.func @transform_3(%arg0: i32) -> (i32, i32) {
    %c0_i32 = arith.constant 0 : i32
    %c0_i32_0 = arith.constant 0 : i32
    return %arg0, %c0_i32 : i32, i32
  }
}

</mosaic_0001>

<llo_original>
// kernel: generator_mlp.1
$region0: #{generator_mlp.1}
  #allocation0 [shape = 'u32[]', space=smem, size = 0x4, offset = 0x4, fixed_abs, tag = 'smem constant byte address 0x4 - core index']
  #allocation1 [shape = 'u32[72,128]{1,0:T(1,128)}', space=vmem, size = 0x9000, scoped, tag = 'internal scratch']
  %s0 = inlined_call_operand.vmem [shape: f32[128,128], index: 0, kind: input, shape index: {}]
  %s1 = inlined_call_operand.hbm [shape: bf16[5,128,128], index: 1, kind: input, shape index: {}]
  %s2 = inlined_call_operand.vmem [shape: f32[5,1,128], index: 2, kind: input, shape index: {}]
  %s3 = inlined_call_operand.vmem [shape: f32[128,128], index: 3, kind: output, shape index: {}]
  %s4 = sld [smem:[#allocation0]]
  $region26: #{generator_mlp.1} parent=0
    _
  %s6 = ssub.s32 1, %s4
  %s7 = scalar_select 0, %s6, %s4
  $region1: #{generator_mlp.1} parent=0
    #allocation2 [shape = 'u8[163840]{0}', space=vmem, size = 0x28000, scoped, tag = 'input window, operand 1, single buffered']
    #allocation3 [shape = 's32[1]{0}', space=sflag, size = 0x4, scoped, tag = 'scoped memory for generator_mlp.1']
    %8 = vsyncpa [#allocation3], 0
    // Predicated region
    $region2: #{generator_mlp.1} parent=1 // pred_check
      _
    $region3: #{generator_mlp.1} parent=1 // pred_check_branch
      %10 = sbr.rel (0) target = $region5
    $region4: #{generator_mlp.1} parent=1 // pred_region
      _
    $region5: #{generator_mlp.1} parent=1 // pred_fallthru
      _
    // Predicated region
    $region6: #{generator_mlp.1} parent=1 // pred_check
      _
    $region7: #{generator_mlp.1} parent=1 // pred_check_branch
      %12 = sbr.rel (0) target = $region9
    $region8: #{generator_mlp.1} parent=1 // pred_region
      %14 = vsyncadd [#allocation3], 0
      %s15 = sshll.u32 %s1, 4
      %s16 = int_to_ptr.hbm [resolvable:$true] %s15
      %s17 = sshll.u32 [#allocation2], 4
      %s18 = int_to_ptr.vmem [resolvable:$true] %s17
      %23 = dma.hbm_to_vmem [thread:$0]  %s16, 5120, %s18, [#allocation3], 64, 64, 4
    $region9: #{generator_mlp.1} parent=1 // pred_fallthru
      _
    // Predicated region
    $region10: #{generator_mlp.1} parent=1 // pred_check
      _
    $region11: #{generator_mlp.1} parent=1 // pred_check_branch
      %25 = sbr.rel (0) target = $region13
    $region12: #{generator_mlp.1} parent=1 // pred_region
      _
    $region13: #{generator_mlp.1} parent=1 // pred_fallthru
      _
    // Predicated region
    $region14: #{generator_mlp.1} parent=1 // pred_check
      _
    $region15: #{generator_mlp.1} parent=1 // pred_check_branch
      %27 = sbr.rel (0) target = $region17
    $region16: #{generator_mlp.1} parent=1 // pred_region
      %29 = dma.done [#allocation3], 5120
    $region17: #{generator_mlp.1} parent=1 // pred_fallthru
      _
    %v30 = vld [vmem:[%s0] sm:$0xff]
    %v31 = vld [vmem:[%s0 + $0x8] sm:$0xff]
    %v32 = vld [vmem:[%s0 + $0x10] sm:$0xff]
    %v33 = vld [vmem:[%s0 + $0x18] sm:$0xff]
    %v34 = vld [vmem:[%s0 + $0x20] sm:$0xff]
    %v35 = vld [vmem:[%s0 + $0x28] sm:$0xff]
    %v36 = vld [vmem:[%s0 + $0x30] sm:$0xff]
    %v37 = vld [vmem:[%s0 + $0x38] sm:$0xff]
    %v38 = vld [vmem:[%s0 + $0x40] sm:$0xff]
    %v39 = vld [vmem:[%s0 + $0x48] sm:$0xff]
    %v40 = vld [vmem:[%s0 + $0x50] sm:$0xff]
    %v41 = vld [vmem:[%s0 + $0x58] sm:$0xff]
    %v42 = vld [vmem:[%s0 + $0x60] sm:$0xff]
    %v43 = vld [vmem:[%s0 + $0x68] sm:$0xff]
    %v44 = vld [vmem:[%s0 + $0x70] sm:$0xff]
    %v45 = vld [vmem:[%s0 + $0x78] sm:$0xff]
    %v46 = vpack.c.bf16 %v31, %v30
    %v47 = vpack.c.bf16 %v33, %v32
    %v48 = vpack.c.bf16 %v35, %v34
    %v49 = vpack.c.bf16 %v37, %v36
    %v50 = vpack.c.bf16 %v39, %v38
    %v51 = vpack.c.bf16 %v41, %v40
    %v52 = vpack.c.bf16 %v43, %v42
    %v53 = vpack.c.bf16 %v45, %v44
    %v54 = vld [vmem:[#allocation2] sm:$0xf]
    %v55 = vld [vmem:[#allocation2 + $0x4] sm:$0xf]
    %v56 = vld [vmem:[#allocation2 + $0x8] sm:$0xf]
    %v57 = vld [vmem:[#allocation2 + $0xc] sm:$0xf]
    %v58 = vld [vmem:[#allocation2 + $0x10] sm:$0xf]
    %v59 = vld [vmem:[#allocation2 + $0x14] sm:$0xf]
    %v60 = vld [vmem:[#allocation2 + $0x18] sm:$0xf]
    %v61 = vld [vmem:[#allocation2 + $0x1c] sm:$0xf]
    %v62 = vld [vmem:[#allocation2 + $0x20] sm:$0xf]
    %v63 = vld [vmem:[#allocation2 + $0x24] sm:$0xf]
    %v64 = vld [vmem:[#allocation2 + $0x28] sm:$0xf]
    %v65 = vld [vmem:[#allocation2 + $0x2c] sm:$0xf]
    %v66 = vld [vmem:[#allocation2 + $0x30] sm:$0xf]
    %v67 = vld [vmem:[#allocation2 + $0x34] sm:$0xf]
    %v68 = vld [vmem:[#allocation2 + $0x38] sm:$0xf]
    %v69 = vld [vmem:[#allocation2 + $0x3c] sm:$0xf]
    %v70 = vld [vmem:[%s2] sm:$0x1]
    %v72 = vperm.slane %v70, 0
    %v90 = vunpack.c.l.b16 %v54
    %v91 = vunpack.c.l.b16 %v55
    %v92 = vunpack.c.l.b16 %v56
    %v93 = vunpack.c.l.b16 %v57
    %v94 = vunpack.c.l.b16 %v58
    %v95 = vunpack.c.l.b16 %v59
    %v96 = vunpack.c.l.b16 %v60
    %v97 = vunpack.c.l.b16 %v61
    %v98 = vunpack.c.l.b16 %v62
    %v99 = vunpack.c.l.b16 %v63
    %v100 = vunpack.c.l.b16 %v64
    %v101 = vunpack.c.l.b16 %v65
    %v102 = vunpack.c.l.b16 %v66
    %v103 = vunpack.c.l.b16 %v67
    %v104 = vunpack.c.l.b16 %v68
    %v105 = vunpack.c.l.b16 %v69
    %v106 = vpack.c.b16 %v91, %v90
    %v107 = vpack.c.b16 %v93, %v92
    %v108 = vpack.c.b16 %v95, %v94
    %v109 = vpack.c.b16 %v97, %v96
    %v110 = vpack.c.b16 %v99, %v98
    %v111 = vpack.c.b16 %v101, %v100
    %v112 = vpack.c.b16 %v103, %v102
    %v113 = vpack.c.b16 %v105, %v104
    %122 = vmatpush.bf16.msra.mxu0 %v113
    %123 = vmatpush.bf16.msra.mxu0 %v112
    %124 = vmatpush.bf16.msra.mxu0 %v111
    %125 = vmatpush.bf16.msra.mxu0 %v110
    %126 = vmatpush.bf16.msra.mxu0 %v109
    %127 = vmatpush.bf16.msra.mxu0 %v108
    %128 = vmatpush.bf16.msra.mxu0 %v107
    %129 = vmatpush.bf16.msra.mxu0 %v106
    %130 = vmatmul.bf16.gmra.mxu0 %v46
    %v131 = vpop.f32.mrf.mxu0
    %v132 = vadd.f32 %v72, %v131
    %v133 = vpop.f32.mrf.mxu0
    %v134 = vadd.f32 %v72, %v133
    %135 = vmatmul.bf16.gmra.mxu0 %v47
    %v136 = vpop.f32.mrf.mxu0
    %v137 = vadd.f32 %v72, %v136
    %v138 = vpop.f32.mrf.mxu0
    %v139 = vadd.f32 %v72, %v138
    %140 = vmatmul.bf16.gmra.mxu0 %v48
    %v141 = vpop.f32.mrf.mxu0
    %v142 = vadd.f32 %v72, %v141
    %v143 = vpop.f32.mrf.mxu0
    %v144 = vadd.f32 %v72, %v143
    %145 = vmatmul.bf16.gmra.mxu0 %v49
    %v146 = vpop.f32.mrf.mxu0
    %v147 = vadd.f32 %v72, %v146
    %v148 = vpop.f32.mrf.mxu0
    %v149 = vadd.f32 %v72, %v148
    %150 = vmatmul.bf16.gmra.mxu0 %v50
    %v151 = vpop.f32.mrf.mxu0
    %v152 = vadd.f32 %v72, %v151
    %v153 = vpop.f32.mrf.mxu0
    %v154 = vadd.f32 %v72, %v153
    %155 = vmatmul.bf16.gmra.mxu0 %v51
    %v156 = vpop.f32.mrf.mxu0
    %v157 = vadd.f32 %v72, %v156
    %v158 = vpop.f32.mrf.mxu0
    %v159 = vadd.f32 %v72, %v158
    %160 = vmatmul.bf16.gmra.mxu0 %v52
    %v161 = vpop.f32.mrf.mxu0
    %v162 = vadd.f32 %v72, %v161
    %v163 = vpop.f32.mrf.mxu0
    %v164 = vadd.f32 %v72, %v163
    %165 = vmatmul.bf16.gmra.mxu0 %v53
    %v166 = vpop.f32.mrf.mxu0
    %v167 = vadd.f32 %v72, %v166
    %v168 = vpop.f32.mrf.mxu0
    %v169 = vadd.f32 %v72, %v168
    %170 = vdwg.mxu0
    %v171 = vmax.f32 %v132, 0.0
    %v172 = vmax.f32 %v134, 0.0
    %v173 = vmax.f32 %v137, 0.0
    %v174 = vmax.f32 %v139, 0.0
    %v175 = vmax.f32 %v142, 0.0
    %v176 = vmax.f32 %v144, 0.0
    %v177 = vmax.f32 %v147, 0.0
    %v178 = vmax.f32 %v149, 0.0
    %v179 = vmax.f32 %v152, 0.0
    %v180 = vmax.f32 %v154, 0.0
    %v181 = vmax.f32 %v157, 0.0
    %v182 = vmax.f32 %v159, 0.0
    %v183 = vmax.f32 %v162, 0.0
    %v184 = vmax.f32 %v164, 0.0
    %v185 = vmax.f32 %v167, 0.0
    %v186 = vmax.f32 %v169, 0.0
    %v187 = vpack.c.bf16 %v172, %v171
    %v188 = vpack.c.bf16 %v174, %v173
    %v189 = vpack.c.bf16 %v176, %v175
    %v190 = vpack.c.bf16 %v178, %v177
    %v191 = vpack.c.bf16 %v180, %v179
    %v192 = vpack.c.bf16 %v182, %v181
    %v193 = vpack.c.bf16 %v184, %v183
    %v194 = vpack.c.bf16 %v186, %v185
    %s195 = scalar_lea.vmem [#allocation2], 64
    %v196 = vld [vmem:[%s195] sm:$0xf]
    %v197 = vld [vmem:[%s195 + $0x4] sm:$0xf]
    %v198 = vld [vmem:[%s195 + $0x8] sm:$0xf]
    %v199 = vld [vmem:[%s195 + $0xc] sm:$0xf]
    %v200 = vld [vmem:[%s195 + $0x10] sm:$0xf]
    %v201 = vld [vmem:[%s195 + $0x14] sm:$0xf]
    %v202 = vld [vmem:[%s195 + $0x18] sm:$0xf]
    %v203 = vld [vmem:[%s195 + $0x1c] sm:$0xf]
    %v204 = vld [vmem:[%s195 + $0x20] sm:$0xf]
    %v205 = vld [vmem:[%s195 + $0x24] sm:$0xf]
    %v206 = vld [vmem:[%s195 + $0x28] sm:$0xf]
    %v207 = vld [vmem:[%s195 + $0x2c] sm:$0xf]
    %v208 = vld [vmem:[%s195 + $0x30] sm:$0xf]
    %v209 = vld [vmem:[%s195 + $0x34] sm:$0xf]
    %v210 = vld [vmem:[%s195 + $0x38] sm:$0xf]
    %v211 = vld [vmem:[%s195 + $0x3c] sm:$0xf]
    %s212 = scalar_lea.vmem %s2, 1
    %v213 = vld [vmem:[%s212] sm:$0x1]
    %v215 = vperm.slane %v213, 0
    %v233 = vunpack.c.l.b16 %v196
    %v234 = vunpack.c.l.b16 %v197
    %v235 = vunpack.c.l.b16 %v198
    %v236 = vunpack.c.l.b16 %v199
    %v237 = vunpack.c.l.b16 %v200
    %v238 = vunpack.c.l.b16 %v201
    %v239 = vunpack.c.l.b16 %v202
    %v240 = vunpack.c.l.b16 %v203
    %v241 = vunpack.c.l.b16 %v204
    %v242 = vunpack.c.l.b16 %v205
    %v243 = vunpack.c.l.b16 %v206
    %v244 = vunpack.c.l.b16 %v207
    %v245 = vunpack.c.l.b16 %v208
    %v246 = vunpack.c.l.b16 %v209
    %v247 = vunpack.c.l.b16 %v210
    %v248 = vunpack.c.l.b16 %v211
    %v249 = vpack.c.b16 %v234, %v233
    %v250 = vpack.c.b16 %v236, %v235
    %v251 = vpack.c.b16 %v238, %v237
    %v252 = vpack.c.b16 %v240, %v239
    %v253 = vpack.c.b16 %v242, %v241
    %v254 = vpack.c.b16 %v244, %v243
    %v255 = vpack.c.b16 %v246, %v245
    %v256 = vpack.c.b16 %v248, %v247
    %265 = vmatpush.bf16.msra.mxu0 %v256
    %266 = vmatpush.bf16.msra.mxu0 %v255
    %267 = vmatpush.bf16.msra.mxu0 %v254
    %268 = vmatpush.bf16.msra.mxu0 %v253
    %269 = vmatpush.bf16.msra.mxu0 %v252
    %270 = vmatpush.bf16.msra.mxu0 %v251
    %271 = vmatpush.bf16.msra.mxu0 %v250
    %272 = vmatpush.bf16.msra.mxu0 %v249
    %273 = vmatmul.bf16.gmra.mxu0 %v187
    %v274 = vpop.f32.mrf.mxu0
    %v275 = vadd.f32 %v215, %v274
    %v276 = vpop.f32.mrf.mxu0
    %v277 = vadd.f32 %v215, %v276
    %278 = vmatmul.bf16.gmra.mxu0 %v188
    %v279 = vpop.f32.mrf.mxu0
    %v280 = vadd.f32 %v215, %v279
    %v281 = vpop.f32.mrf.mxu0
    %v282 = vadd.f32 %v215, %v281
    %283 = vmatmul.bf16.gmra.mxu0 %v189
    %v284 = vpop.f32.mrf.mxu0
    %v285 = vadd.f32 %v215, %v284
    %v286 = vpop.f32.mrf.mxu0
    %v287 = vadd.f32 %v215, %v286
    %288 = vmatmul.bf16.gmra.mxu0 %v190
    %v289 = vpop.f32.mrf.mxu0
    %v290 = vadd.f32 %v215, %v289
    %v291 = vpop.f32.mrf.mxu0
    %v292 = vadd.f32 %v215, %v291
    %293 = vmatmul.bf16.gmra.mxu0 %v191
    %v294 = vpop.f32.mrf.mxu0
    %v295 = vadd.f32 %v215, %v294
    %v296 = vpop.f32.mrf.mxu0
    %v297 = vadd.f32 %v215, %v296
    %298 = vmatmul.bf16.gmra.mxu0 %v192
    %v299 = vpop.f32.mrf.mxu0
    %v300 = vadd.f32 %v215, %v299
    %v301 = vpop.f32.mrf.mxu0
    %v302 = vadd.f32 %v215, %v301
    %303 = vmatmul.bf16.gmra.mxu0 %v193
    %v304 = vpop.f32.mrf.mxu0
    %v305 = vadd.f32 %v215, %v304
    %v306 = vpop.f32.mrf.mxu0
    %v307 = vadd.f32 %v215, %v306
    %308 = vmatmul.bf16.gmra.mxu0 %v194
    %v309 = vpop.f32.mrf.mxu0
    %v310 = vadd.f32 %v215, %v309
    %v311 = vpop.f32.mrf.mxu0
    %v312 = vadd.f32 %v215, %v311
    %313 = vdwg.mxu0
    %v314 = vmax.f32 %v275, 0.0
    %v315 = vmax.f32 %v277, 0.0
    %v316 = vmax.f32 %v280, 0.0
    %v317 = vmax.f32 %v282, 0.0
    %v318 = vmax.f32 %v285, 0.0
    %v319 = vmax.f32 %v287, 0.0
    %v320 = vmax.f32 %v290, 0.0
    %v321 = vmax.f32 %v292, 0.0
    %v322 = vmax.f32 %v295, 0.0
    %v323 = vmax.f32 %v297, 0.0
    %v324 = vmax.f32 %v300, 0.0
    %v325 = vmax.f32 %v302, 0.0
    %v326 = vmax.f32 %v305, 0.0
    %v327 = vmax.f32 %v307, 0.0
    %v328 = vmax.f32 %v310, 0.0
    %v329 = vmax.f32 %v312, 0.0
    %v330 = vpack.c.bf16 %v315, %v314
    %v331 = vpack.c.bf16 %v317, %v316
    %v332 = vpack.c.bf16 %v319, %v318
    %v333 = vpack.c.bf16 %v321, %v320
    %v334 = vpack.c.bf16 %v323, %v322
    %v335 = vpack.c.bf16 %v325, %v324
    %v336 = vpack.c.bf16 %v327, %v326
    %v337 = vpack.c.bf16 %v329, %v328
    %s338 = scalar_lea.vmem [#allocation2], 128
    %v339 = vld [vmem:[%s338] sm:$0xf]
    %v340 = vld [vmem:[%s338 + $0x4] sm:$0xf]
    %v341 = vld [vmem:[%s338 + $0x8] sm:$0xf]
    %v342 = vld [vmem:[%s338 + $0xc] sm:$0xf]
    %v343 = vld [vmem:[%s338 + $0x10] sm:$0xf]
    %v344 = vld [vmem:[%s338 + $0x14] sm:$0xf]
    %v345 = vld [vmem:[%s338 + $0x18] sm:$0xf]
    %v346 = vld [vmem:[%s338 + $0x1c] sm:$0xf]
    %v347 = vld [vmem:[%s338 + $0x20] sm:$0xf]
    %v348 = vld [vmem:[%s338 + $0x24] sm:$0xf]
    %v349 = vld [vmem:[%s338 + $0x28] sm:$0xf]
    %v350 = vld [vmem:[%s338 + $0x2c] sm:$0xf]
    %v351 = vld [vmem:[%s338 + $0x30] sm:$0xf]
    %v352 = vld [vmem:[%s338 + $0x34] sm:$0xf]
    %v353 = vld [vmem:[%s338 + $0x38] sm:$0xf]
    %v354 = vld [vmem:[%s338 + $0x3c] sm:$0xf]
    %s355 = scalar_lea.vmem %s2, 2
    %v356 = vld [vmem:[%s355] sm:$0x1]
    %v358 = vperm.slane %v356, 0
    %v376 = vunpack.c.l.b16 %v339
    %v377 = vunpack.c.l.b16 %v340
    %v378 = vunpack.c.l.b16 %v341
    %v379 = vunpack.c.l.b16 %v342
    %v380 = vunpack.c.l.b16 %v343
    %v381 = vunpack.c.l.b16 %v344
    %v382 = vunpack.c.l.b16 %v345
    %v383 = vunpack.c.l.b16 %v346
    %v384 = vunpack.c.l.b16 %v347
    %v385 = vunpack.c.l.b16 %v348
    %v386 = vunpack.c.l.b16 %v349
    %v387 = vunpack.c.l.b16 %v350
    %v388 = vunpack.c.l.b16 %v351
    %v389 = vunpack.c.l.b16 %v352
    %v390 = vunpack.c.l.b16 %v353
    %v391 = vunpack.c.l.b16 %v354
    %v392 = vpack.c.b16 %v377, %v376
    %v393 = vpack.c.b16 %v379, %v378
    %v394 = vpack.c.b16 %v381, %v380
    %v395 = vpack.c.b16 %v383, %v382
    %v396 = vpack.c.b16 %v385, %v384
    %v397 = vpack.c.b16 %v387, %v386
    %v398 = vpack.c.b16 %v389, %v388
    %v399 = vpack.c.b16 %v391, %v390
    %408 = vmatpush.bf16.msra.mxu0 %v399
    %409 = vmatpush.bf16.msra.mxu0 %v398
    %410 = vmatpush.bf16.msra.mxu0 %v397
    %411 = vmatpush.bf16.msra.mxu0 %v396
    %412 = vmatpush.bf16.msra.mxu0 %v395
    %413 = vmatpush.bf16.msra.mxu0 %v394
    %414 = vmatpush.bf16.msra.mxu0 %v393
    %415 = vmatpush.bf16.msra.mxu0 %v392
    %416 = vmatmul.bf16.gmra.mxu0 %v330
    %v417 = vpop.f32.mrf.mxu0
    %v418 = vadd.f32 %v358, %v417
    %v419 = vpop.f32.mrf.mxu0
    %v420 = vadd.f32 %v358, %v419
    %421 = vmatmul.bf16.gmra.mxu0 %v331
    %v422 = vpop.f32.mrf.mxu0
    %v423 = vadd.f32 %v358, %v422
    %v424 = vpop.f32.mrf.mxu0
    %v425 = vadd.f32 %v358, %v424
    %426 = vmatmul.bf16.gmra.mxu0 %v332
    %v427 = vpop.f32.mrf.mxu0
    %v428 = vadd.f32 %v358, %v427
    %v429 = vpop.f32.mrf.mxu0
    %v430 = vadd.f32 %v358, %v429
    %431 = vmatmul.bf16.gmra.mxu0 %v333
    %v432 = vpop.f32.mrf.mxu0
    %v433 = vadd.f32 %v358, %v432
    %v434 = vpop.f32.mrf.mxu0
    %v435 = vadd.f32 %v358, %v434
    %436 = vmatmul.bf16.gmra.mxu0 %v334
    %v437 = vpop.f32.mrf.mxu0
    %v438 = vadd.f32 %v358, %v437
    %v439 = vpop.f32.mrf.mxu0
    %v440 = vadd.f32 %v358, %v439
    %441 = vmatmul.bf16.gmra.mxu0 %v335
    %v442 = vpop.f32.mrf.mxu0
    %v443 = vadd.f32 %v358, %v442
    %v444 = vpop.f32.mrf.mxu0
    %v445 = vadd.f32 %v358, %v444
    %446 = vmatmul.bf16.gmra.mxu0 %v336
    %v447 = vpop.f32.mrf.mxu0
    %v448 = vadd.f32 %v358, %v447
    %v449 = vpop.f32.mrf.mxu0
    %v450 = vadd.f32 %v358, %v449
    %451 = vmatmul.bf16.gmra.mxu0 %v337
    %v452 = vpop.f32.mrf.mxu0
    %v453 = vadd.f32 %v358, %v452
    %v454 = vpop.f32.mrf.mxu0
    %v455 = vadd.f32 %v358, %v454
    %456 = vdwg.mxu0
    %v457 = vmax.f32 %v418, 0.0
    %v458 = vmax.f32 %v420, 0.0
    %v459 = vmax.f32 %v423, 0.0
    %v460 = vmax.f32 %v425, 0.0
    %v461 = vmax.f32 %v428, 0.0
    %v462 = vmax.f32 %v430, 0.0
    %v463 = vmax.f32 %v433, 0.0
    %v464 = vmax.f32 %v435, 0.0
    %v465 = vmax.f32 %v438, 0.0
    %v466 = vmax.f32 %v440, 0.0
    %v467 = vmax.f32 %v443, 0.0
    %v468 = vmax.f32 %v445, 0.0
    %v469 = vmax.f32 %v448, 0.0
    %v470 = vmax.f32 %v450, 0.0
    %v471 = vmax.f32 %v453, 0.0
    %v472 = vmax.f32 %v455, 0.0
    %v473 = vpack.c.bf16 %v458, %v457
    %v474 = vpack.c.bf16 %v460, %v459
    %v475 = vpack.c.bf16 %v462, %v461
    %v476 = vpack.c.bf16 %v464, %v463
    %v477 = vpack.c.bf16 %v466, %v465
    %v478 = vpack.c.bf16 %v468, %v467
    %v479 = vpack.c.bf16 %v470, %v469
    %v480 = vpack.c.bf16 %v472, %v471
    %s481 = scalar_lea.vmem [#allocation2], 192
    %v482 = vld [vmem:[%s481] sm:$0xf]
    %v483 = vld [vmem:[%s481 + $0x4] sm:$0xf]
    %v484 = vld [vmem:[%s481 + $0x8] sm:$0xf]
    %v485 = vld [vmem:[%s481 + $0xc] sm:$0xf]
    %v486 = vld [vmem:[%s481 + $0x10] sm:$0xf]
    %v487 = vld [vmem:[%s481 + $0x14] sm:$0xf]
    %v488 = vld [vmem:[%s481 + $0x18] sm:$0xf]
    %v489 = vld [vmem:[%s481 + $0x1c] sm:$0xf]
    %v490 = vld [vmem:[%s481 + $0x20] sm:$0xf]
    %v491 = vld [vmem:[%s481 + $0x24] sm:$0xf]
    %v492 = vld [vmem:[%s481 + $0x28] sm:$0xf]
    %v493 = vld [vmem:[%s481 + $0x2c] sm:$0xf]
    %v494 = vld [vmem:[%s481 + $0x30] sm:$0xf]
    %v495 = vld [vmem:[%s481 + $0x34] sm:$0xf]
    %v496 = vld [vmem:[%s481 + $0x38] sm:$0xf]
    %v497 = vld [vmem:[%s481 + $0x3c] sm:$0xf]
    %s498 = scalar_lea.vmem %s2, 3
    %v499 = vld [vmem:[%s498] sm:$0x1]
    %v501 = vperm.slane %v499, 0
    %v519 = vunpack.c.l.b16 %v482
    %v520 = vunpack.c.l.b16 %v483
    %v521 = vunpack.c.l.b16 %v484
    %v522 = vunpack.c.l.b16 %v485
    %v523 = vunpack.c.l.b16 %v486
    %v524 = vunpack.c.l.b16 %v487
    %v525 = vunpack.c.l.b16 %v488
    %v526 = vunpack.c.l.b16 %v489
    %v527 = vunpack.c.l.b16 %v490
    %v528 = vunpack.c.l.b16 %v491
    %v529 = vunpack.c.l.b16 %v492
    %v530 = vunpack.c.l.b16 %v493
    %v531 = vunpack.c.l.b16 %v494
    %v532 = vunpack.c.l.b16 %v495
    %v533 = vunpack.c.l.b16 %v496
    %v534 = vunpack.c.l.b16 %v497
    %v535 = vpack.c.b16 %v520, %v519
    %v536 = vpack.c.b16 %v522, %v521
    %v537 = vpack.c.b16 %v524, %v523
    %v538 = vpack.c.b16 %v526, %v525
    %v539 = vpack.c.b16 %v528, %v527
    %v540 = vpack.c.b16 %v530, %v529
    %v541 = vpack.c.b16 %v532, %v531
    %v542 = vpack.c.b16 %v534, %v533
    %551 = vmatpush.bf16.msra.mxu0 %v542
    %552 = vmatpush.bf16.msra.mxu0 %v541
    %553 = vmatpush.bf16.msra.mxu0 %v540
    %554 = vmatpush.bf16.msra.mxu0 %v539
    %555 = vmatpush.bf16.msra.mxu0 %v538
    %556 = vmatpush.bf16.msra.mxu0 %v537
    %557 = vmatpush.bf16.msra.mxu0 %v536
    %558 = vmatpush.bf16.msra.mxu0 %v535
    %559 = vmatmul.bf16.gmra.mxu0 %v473
    %v560 = vpop.f32.mrf.mxu0
    %v561 = vadd.f32 %v501, %v560
    %v562 = vpop.f32.mrf.mxu0
    %v563 = vadd.f32 %v501, %v562
    %564 = vmatmul.bf16.gmra.mxu0 %v474
    %v565 = vpop.f32.mrf.mxu0
    %v566 = vadd.f32 %v501, %v565
    %v567 = vpop.f32.mrf.mxu0
    %v568 = vadd.f32 %v501, %v567
    %569 = vmatmul.bf16.gmra.mxu0 %v475
    %v570 = vpop.f32.mrf.mxu0
    %v571 = vadd.f32 %v501, %v570
    %v572 = vpop.f32.mrf.mxu0
    %v573 = vadd.f32 %v501, %v572
    %574 = vmatmul.bf16.gmra.mxu0 %v476
    %v575 = vpop.f32.mrf.mxu0
    %v576 = vadd.f32 %v501, %v575
    %v577 = vpop.f32.mrf.mxu0
    %v578 = vadd.f32 %v501, %v577
    %579 = vmatmul.bf16.gmra.mxu0 %v477
    %v580 = vpop.f32.mrf.mxu0
    %v581 = vadd.f32 %v501, %v580
    %v582 = vpop.f32.mrf.mxu0
    %v583 = vadd.f32 %v501, %v582
    %584 = vmatmul.bf16.gmra.mxu0 %v478
    %v585 = vpop.f32.mrf.mxu0
    %v586 = vadd.f32 %v501, %v585
    %v587 = vpop.f32.mrf.mxu0
    %v588 = vadd.f32 %v501, %v587
    %589 = vmatmul.bf16.gmra.mxu0 %v479
    %v590 = vpop.f32.mrf.mxu0
    %v591 = vadd.f32 %v501, %v590
    %v592 = vpop.f32.mrf.mxu0
    %v593 = vadd.f32 %v501, %v592
    %594 = vmatmul.bf16.gmra.mxu0 %v480
    %v595 = vpop.f32.mrf.mxu0
    %v596 = vadd.f32 %v501, %v595
    %v597 = vpop.f32.mrf.mxu0
    %v598 = vadd.f32 %v501, %v597
    %599 = vdwg.mxu0
    %v600 = vmax.f32 %v561, 0.0
    %v601 = vmax.f32 %v563, 0.0
    %v602 = vmax.f32 %v566, 0.0
    %v603 = vmax.f32 %v568, 0.0
    %v604 = vmax.f32 %v571, 0.0
    %v605 = vmax.f32 %v573, 0.0
    %v606 = vmax.f32 %v576, 0.0
    %v607 = vmax.f32 %v578, 0.0
    %v608 = vmax.f32 %v581, 0.0
    %v609 = vmax.f32 %v583, 0.0
    %v610 = vmax.f32 %v586, 0.0
    %v611 = vmax.f32 %v588, 0.0
    %v612 = vmax.f32 %v591, 0.0
    %v613 = vmax.f32 %v593, 0.0
    %v614 = vmax.f32 %v596, 0.0
    %v615 = vmax.f32 %v598, 0.0
    %v616 = vpack.c.bf16 %v601, %v600
    %v617 = vpack.c.bf16 %v603, %v602
    %v618 = vpack.c.bf16 %v605, %v604
    %v619 = vpack.c.bf16 %v607, %v606
    %v620 = vpack.c.bf16 %v609, %v608
    %v621 = vpack.c.bf16 %v611, %v610
    %v622 = vpack.c.bf16 %v613, %v612
    %v623 = vpack.c.bf16 %v615, %v614
    %s624 = scalar_lea.vmem [#allocation2], 256
    %v625 = vld [vmem:[%s624] sm:$0xf]
    %v626 = vld [vmem:[%s624 + $0x4] sm:$0xf]
    %v627 = vld [vmem:[%s624 + $0x8] sm:$0xf]
    %v628 = vld [vmem:[%s624 + $0xc] sm:$0xf]
    %v629 = vld [vmem:[%s624 + $0x10] sm:$0xf]
    %v630 = vld [vmem:[%s624 + $0x14] sm:$0xf]
    %v631 = vld [vmem:[%s624 + $0x18] sm:$0xf]
    %v632 = vld [vmem:[%s624 + $0x1c] sm:$0xf]
    %v633 = vld [vmem:[%s624 + $0x20] sm:$0xf]
    %v634 = vld [vmem:[%s624 + $0x24] sm:$0xf]
    %v635 = vld [vmem:[%s624 + $0x28] sm:$0xf]
    %v636 = vld [vmem:[%s624 + $0x2c] sm:$0xf]
    %v637 = vld [vmem:[%s624 + $0x30] sm:$0xf]
    %v638 = vld [vmem:[%s624 + $0x34] sm:$0xf]
    %v639 = vld [vmem:[%s624 + $0x38] sm:$0xf]
    %v640 = vld [vmem:[%s624 + $0x3c] sm:$0xf]
    %s641 = scalar_lea.vmem %s2, 4
    %v642 = vld [vmem:[%s641] sm:$0x1]
    %v644 = vperm.slane %v642, 0
    %v662 = vunpack.c.l.b16 %v625
    %v663 = vunpack.c.l.b16 %v626
    %v664 = vunpack.c.l.b16 %v627
    %v665 = vunpack.c.l.b16 %v628
    %v666 = vunpack.c.l.b16 %v629
    %v667 = vunpack.c.l.b16 %v630
    %v668 = vunpack.c.l.b16 %v631
    %v669 = vunpack.c.l.b16 %v632
    %v670 = vunpack.c.l.b16 %v633
    %v671 = vunpack.c.l.b16 %v634
    %v672 = vunpack.c.l.b16 %v635
    %v673 = vunpack.c.l.b16 %v636
    %v674 = vunpack.c.l.b16 %v637
    %v675 = vunpack.c.l.b16 %v638
    %v676 = vunpack.c.l.b16 %v639
    %v677 = vunpack.c.l.b16 %v640
    %v678 = vpack.c.b16 %v663, %v662
    %v679 = vpack.c.b16 %v665, %v664
    %v680 = vpack.c.b16 %v667, %v666
    %v681 = vpack.c.b16 %v669, %v668
    %v682 = vpack.c.b16 %v671, %v670
    %v683 = vpack.c.b16 %v673, %v672
    %v684 = vpack.c.b16 %v675, %v674
    %v685 = vpack.c.b16 %v677, %v676
    %694 = vmatpush.bf16.msra.mxu0 %v685
    %695 = vmatpush.bf16.msra.mxu0 %v684
    %696 = vmatpush.bf16.msra.mxu0 %v683
    %697 = vmatpush.bf16.msra.mxu0 %v682
    %698 = vmatpush.bf16.msra.mxu0 %v681
    %699 = vmatpush.bf16.msra.mxu0 %v680
    %700 = vmatpush.bf16.msra.mxu0 %v679
    %701 = vmatpush.bf16.msra.mxu0 %v678
    %702 = vmatmul.bf16.gmra.mxu0 %v616
    %v703 = vpop.f32.mrf.mxu0
    %v704 = vadd.f32 %v644, %v703
    %v705 = vpop.f32.mrf.mxu0
    %v706 = vadd.f32 %v644, %v705
    %707 = vmatmul.bf16.gmra.mxu0 %v617
    %v708 = vpop.f32.mrf.mxu0
    %v709 = vadd.f32 %v644, %v708
    %v710 = vpop.f32.mrf.mxu0
    %v711 = vadd.f32 %v644, %v710
    %712 = vmatmul.bf16.gmra.mxu0 %v618
    %v713 = vpop.f32.mrf.mxu0
    %v714 = vadd.f32 %v644, %v713
    %v715 = vpop.f32.mrf.mxu0
    %v716 = vadd.f32 %v644, %v715
    %717 = vmatmul.bf16.gmra.mxu0 %v619
    %v718 = vpop.f32.mrf.mxu0
    %v719 = vadd.f32 %v644, %v718
    %v720 = vpop.f32.mrf.mxu0
    %v721 = vadd.f32 %v644, %v720
    %722 = vmatmul.bf16.gmra.mxu0 %v620
    %v723 = vpop.f32.mrf.mxu0
    %v724 = vadd.f32 %v644, %v723
    %v725 = vpop.f32.mrf.mxu0
    %v726 = vadd.f32 %v644, %v725
    %727 = vmatmul.bf16.gmra.mxu0 %v621
    %v728 = vpop.f32.mrf.mxu0
    %v729 = vadd.f32 %v644, %v728
    %v730 = vpop.f32.mrf.mxu0
    %v731 = vadd.f32 %v644, %v730
    %732 = vmatmul.bf16.gmra.mxu0 %v622
    %v733 = vpop.f32.mrf.mxu0
    %v734 = vadd.f32 %v644, %v733
    %v735 = vpop.f32.mrf.mxu0
    %v736 = vadd.f32 %v644, %v735
    %737 = vmatmul.bf16.gmra.mxu0 %v623
    %v738 = vpop.f32.mrf.mxu0
    %v739 = vadd.f32 %v644, %v738
    %v740 = vpop.f32.mrf.mxu0
    %v741 = vadd.f32 %v644, %v740
    %742 = vdwg.mxu0
    %743 = vst [vmem:[%s3] sm:$0xff] %v704
    %744 = vst [vmem:[%s3 + $0x8] sm:$0xff] %v706
    %745 = vst [vmem:[%s3 + $0x10] sm:$0xff] %v709
    %746 = vst [vmem:[%s3 + $0x18] sm:$0xff] %v711
    %747 = vst [vmem:[%s3 + $0x20] sm:$0xff] %v714
    %748 = vst [vmem:[%s3 + $0x28] sm:$0xff] %v716
    %749 = vst [vmem:[%s3 + $0x30] sm:$0xff] %v719
    %750 = vst [vmem:[%s3 + $0x38] sm:$0xff] %v721
    %751 = vst [vmem:[%s3 + $0x40] sm:$0xff] %v724
    %752 = vst [vmem:[%s3 + $0x48] sm:$0xff] %v726
    %753 = vst [vmem:[%s3 + $0x50] sm:$0xff] %v729
    %754 = vst [vmem:[%s3 + $0x58] sm:$0xff] %v731
    %755 = vst [vmem:[%s3 + $0x60] sm:$0xff] %v734
    %756 = vst [vmem:[%s3 + $0x68] sm:$0xff] %v736
    %757 = vst [vmem:[%s3 + $0x70] sm:$0xff] %v739
    %758 = vst [vmem:[%s3 + $0x78] sm:$0xff] %v741
    // Predicated region
    $region18: #{generator_mlp.1} parent=1 // pred_check
      _
    $region19: #{generator_mlp.1} parent=1 // pred_check_branch
      %760 = sbr.rel (0) target = $region21
    $region20: #{generator_mlp.1} parent=1 // pred_region
      _
    $region21: #{generator_mlp.1} parent=1 // pred_fallthru
      _
    // Predicated region
    $region22: #{generator_mlp.1} parent=1 // pred_check
      _
    $region23: #{generator_mlp.1} parent=1 // pred_check_branch
      %762 = sbr.rel (0) target = $region25
    $region24: #{generator_mlp.1} parent=1 // pred_region
      _
    $region25: #{generator_mlp.1} parent=1 // pred_fallthru
      _
    %763 = vsyncpa [#allocation3], 1

</llo_original>
